<compile_context>
chip_gen: v6e
topology: v6e:2x2x1
jax: 0.10.0
libtpu: 0.0.40
codegen_flags: <defaults>
</compile_context>

<pallas_src>
import functools
import numpy as np
import jax
import jax.numpy as jnp
from jax.experimental import pallas as pl
from jax.experimental.pallas import tpu as pltpu

_LANE = 128
_TM_MAX = 512
_TN_MAX = 512
_TK_MAX = 512


def _round_up(x, m):
    return ((x + m - 1) // m) * m


def _sublane(itemsize):
    # f32 packs 8 rows per vreg sublane group, bf16/fp16 pack 16.
    return 8 if itemsize >= 4 else 16


def _choose_kn_tiles(H, E):
    # N tile: lane-dense output, never below 128 (pad H up instead of shrinking tn).
    tn = _round_up(H, _LANE) if H <= _TN_MAX else _TN_MAX
    # K tile: full extent when small (no padding needed), else 512 (a 256-multiple
    # keeps the 256x256 MXU on v6e/v7x fully fed; also fine for v5e's 128-wide MXU).
    tk = E if E <= _TK_MAX else _TK_MAX
    return tn, tk


def _choose_m_tile(M, itemsize):
    sub = _sublane(itemsize)
    if M < 2 * sub:
        return M  # full extent; too small to usefully split across cores
    # Guarantee >= 2 M tiles so dimension_semantics="parallel" can shard the work
    # across the two v7x TensorCores even for modest M.
    return min(_TM_MAX, _round_up(-(-M // 2), sub))


def _matmul_kernel_acc(x_ref, w_ref, o_ref, acc_ref):
    """General path: f32 VMEM accumulator, cast to out dtype on the last K step."""
    k = pl.program_id(2)
    part = jnp.dot(x_ref[...], w_ref[...], preferred_element_type=jnp.float32)

    @pl.when(k == 0)
    def _():
        acc_ref[...] = part          # no separate zero-init pass

    @pl.when(k > 0)
    def _():
        acc_ref[...] += part

    @pl.when(k == pl.num_programs(2) - 1)
    def _():
        o_ref[...] = acc_ref[...].astype(o_ref.dtype)


def _matmul_kernel_f32_out(x_ref, w_ref, o_ref):
    """f32 output: accumulate directly in the resident output tile (no scratch)."""
    k = pl.program_id(2)
    part = jnp.dot(x_ref[...], w_ref[...], preferred_element_type=jnp.float32)

    @pl.when(k == 0)
    def _():
        o_ref[...] = part

    @pl.when(k > 0)
    def _():
        o_ref[...] += part


def prepare_key_weight(w, compute_dtype=None):
    """One-time parameter prep (do this at init time and cache the result).

    w: (dim_hidden, dim_embed) in PyTorch Linear layout.
    Returns W^T padded to (Ep, Hp) so the kernel output is lane-dense and no
    per-call transpose / pad HBM passes are paid.
    """
    H, E = w.shape
    tn, tk = _choose_kn_tiles(H, E)
    Hp = _round_up(H, tn)
    Ep = _round_up(E, tk)
    wt = jnp.transpose(w)
    if compute_dtype is not None:
        wt = wt.astype(compute_dtype)
    if (Ep, Hp) != (E, H):
        wt = jnp.pad(wt, ((0, Ep - E), (0, Hp - H)))
    return wt


def key_forward_prepared(x, wt_p, dim_hidden, *, out_dtype=None, compute_dtype=None):
    """y = x @ W.T with W pre-transposed/padded by prepare_key_weight."""
    if out_dtype is None:
        out_dtype = x.dtype
    *lead, E = x.shape
    Ep, Hp = wt_p.shape
    H = dim_hidden
    tn, tk = _choose_kn_tiles(H, E)
    assert Hp == _round_up(H, tn) and Ep == _round_up(E, tk), (
        "prepared weight does not match the tiling for these shapes")

    x2 = x.reshape(-1, E)
    if compute_dtype is not None:
        x2 = x2.astype(compute_dtype)
    M = x2.shape[0]
    tm = _choose_m_tile(M, jnp.dtype(x2.dtype).itemsize)
    Mp = _round_up(M, tm)
    if (Mp, Ep) != (M, E):   # skip the pad op entirely when already tile multiples
        x2 = jnp.pad(x2, ((0, Mp - M), (0, Ep - E)))

    grid = (Mp // tm, Hp // tn, Ep // tk)

    in_bytes = jnp.dtype(x2.dtype).itemsize
    out_bytes = jnp.dtype(out_dtype).itemsize
    cost = pl.CostEstimate(
        flops=2 * M * H * E,
        transcendentals=0,
        bytes_accessed=(Mp * Ep * grid[1] + Ep * Hp * grid[0]) * in_bytes
        + Mp * Hp * out_bytes,
    )

    in_specs = [
        pl.BlockSpec((tm, tk), lambda i, j, k: (i, k)),   # x tile
        pl.BlockSpec((tk, tn), lambda i, j, k: (k, j)),   # W^T tile
    ]
    out_spec = pl.BlockSpec((tm, tn), lambda i, j, k: (i, j))

    compiler_params = pltpu.CompilerParams(
        dimension_semantics=("parallel", "parallel", "arbitrary"),
        # Double-buffered 512^3 f32 tiles (+acc) are < 8 MiB; 32 MiB is explicit
        # and safe on every generation (v7x has only 64 MiB physical VMEM).
        vmem_limit_bytes=32 * 1024 * 1024,
    )

    if jnp.dtype(out_dtype) == jnp.float32:
        out = pl.pallas_call(
            _matmul_kernel_f32_out,
            grid=grid,
            in_specs=in_specs,
            out_specs=out_spec,
            out_shape=jax.ShapeDtypeStruct((Mp, Hp), out_dtype),
            compiler_params=compiler_params,
            cost_estimate=cost,
        )(x2, wt_p)
    else:
        out = pl.pallas_call(
            _matmul_kernel_acc,
            grid=grid,
            in_specs=in_specs,
            out_specs=out_spec,
            out_shape=jax.ShapeDtypeStruct((Mp, Hp), out_dtype),
            scratch_shapes=[pltpu.VMEM((tm, tn), jnp.float32)],
            compiler_params=compiler_params,
            cost_estimate=cost,
        )(x2, wt_p)

    return out[:M, :H].reshape(*lead, H)


def key_forward(x, w, *, out_dtype=None, compute_dtype=None):
    """Convenience single-shot wrapper. Prefer caching prepare_key_weight's output
    and jitting key_forward_prepared so the transpose/pad is not paid per call."""
    wt_p = prepare_key_weight(w, compute_dtype=compute_dtype)
    return key_forward_prepared(x, wt_p, w.shape[0],
                                out_dtype=out_dtype, compute_dtype=compute_dtype)


def reference(x, w):
    """Pure-JAX reproduction of the PyTorch forward (highest precision)."""
    return jnp.matmul(x, w.T, precision=jax.lax.Precision.HIGHEST)


if __name__ == "__main__":
    B, S = 2, 8
    dim_embed, dim_hidden = 32, 32

    key = jax.random.PRNGKey(0)
    kx, kw = jax.random.split(key)
    x = jax.random.normal(kx, (B, S, dim_embed), jnp.float32)
    # PyTorch Linear weight layout: (out_features, in_features) = (dim_hidden, dim_embed)
    w = jax.random.normal(kw, (dim_hidden, dim_embed), jnp.float32) * 0.1

    # One-time parameter prep (transpose + pad), then jit the forward so the
    # activation reshape/pad fuses with surrounding XLA ops.
    wt_p = prepare_key_weight(w)
    fwd = jax.jit(functools.partial(key_forward_prepared, dim_hidden=dim_hidden))

    y = fwd(x, wt_p)
    jax.block_until_ready(y)

    y_ref = reference(x, w)
    np.testing.assert_allclose(np.asarray(y), np.asarray(y_ref), rtol=2e-3, atol=2e-3)

    print("KERNEL_OK")
</pallas_src>

<mosaic_0001>
module attributes {stable_mosaic.version = 11 : i64} {
  func.func @_matmul_kernel_f32_out(%arg0: i32, %arg1: i32, %arg2: i32, %arg3: memref<8x32xf32, #tpu.memory_space<vmem>>, %arg4: memref<32x128xf32, #tpu.memory_space<vmem>>, %arg5: memref<8x128xf32, #tpu.memory_space<vmem>>) attributes {dimension_semantics = [#tpu.dimension_semantics<parallel>, #tpu.dimension_semantics<parallel>, #tpu.dimension_semantics<arbitrary>], iteration_bounds = array<i64: 2, 1, 1>, scalar_prefetch = 0 : i64, scratch_operands = 0 : i64, tpu.core_type = #tpu.core_type<tc>, window_params = [{transform_indices = @transform_0, window_bounds = array<i64: 8, 32>}, {transform_indices = @transform_1, window_bounds = array<i64: 32, 128>}, {transform_indices = @transform_2, window_bounds = array<i64: 8, 128>}]} {
    %c0 = arith.constant 0 : index
    %c0_0 = arith.constant 0 : index
    %0 = vector.load %arg3[%c0, %c0_0] : memref<8x32xf32, #tpu.memory_space<vmem>>, vector<8x32xf32>
    %c0_1 = arith.constant 0 : index
    %c0_2 = arith.constant 0 : index
    %1 = vector.load %arg4[%c0_1, %c0_2] : memref<32x128xf32, #tpu.memory_space<vmem>>, vector<32x128xf32>
    %cst = arith.constant dense<0.000000e+00> : vector<8x128xf32>
    %2 = tpu.matmul %0, %1, %cst {dimension_numbers = #tpu.dot_dimension_numbers<[1], [0], [0], [1], [0, 0, 1, 1], [], []>} : vector<8x32xf32>, vector<32x128xf32>, vector<8x128xf32> -> vector<8x128xf32>
    %c0_i32 = arith.constant 0 : i32
    %3 = arith.cmpi eq, %arg2, %c0_i32 : i32
    %4 = arith.extui %3 : i1 to i32
    %c0_i32_3 = arith.constant 0 : i32
    %5 = arith.cmpi ne, %4, %c0_i32_3 : i32
    scf.if %5 {
      %c0_6 = arith.constant 0 : index
      %c0_7 = arith.constant 0 : index
      %9 = vector.load %arg5[%c0_6, %c0_7] : memref<8x128xf32, #tpu.memory_space<vmem>>, vector<8x128xf32>
      tpu.vector_store %arg5[%c0_6, %c0_7], %2 {strides = array<i32>} : memref<8x128xf32, #tpu.memory_space<vmem>>, vector<8x128xf32>,
    } else {
    }
    %c0_i32_4 = arith.constant 0 : i32
    %6 = arith.cmpi sgt, %arg2, %c0_i32_4 : i32
    %7 = arith.extui %6 : i1 to i32
    %c0_i32_5 = arith.constant 0 : i32
    %8 = arith.cmpi ne, %7, %c0_i32_5 : i32
    scf.if %8 {
      %c0_6 = arith.constant 0 : index
      %c0_7 = arith.constant 0 : index
      %9 = vector.load %arg5[%c0_6, %c0_7] : memref<8x128xf32, #tpu.memory_space<vmem>>, vector<8x128xf32>
      %10 = arith.addf %9, %2 : vector<8x128xf32>
      %c0_8 = arith.constant 0 : index
      %c0_9 = arith.constant 0 : index
      %11 = vector.load %arg5[%c0_8, %c0_9] : memref<8x128xf32, #tpu.memory_space<vmem>>, vector<8x128xf32>
      tpu.vector_store %arg5[%c0_8, %c0_9], %10 {strides = array<i32>} : memref<8x128xf32, #tpu.memory_space<vmem>>, vector<8x128xf32>,
    } else {
    }
    return
  }
  func.func @transform_0(%arg0: i32, %arg1: i32, %arg2: i32) -> (i32, i32) {
    %c0_i32 = arith.constant 0 : i32
    return %arg0, %arg2 : i32, i32
  }
  func.func @transform_1(%arg0: i32, %arg1: i32, %arg2: i32) -> (i32, i32) {
    %c0_i32 = arith.constant 0 : i32
    return %arg2, %arg1 : i32, i32
  }
  func.func @transform_2(%arg0: i32, %arg1: i32, %arg2: i32) -> (i32, i32) {
    %c0_i32 = arith.constant 0 : i32
    return %arg0, %arg1 : i32, i32
  }
}

</mosaic_0001>

<llo_original>
// kernel: key_forward_prepared.1
$region0: #{key_forward_prepared.1}
  #allocation0 [shape = 'u32[]', space=smem, size = 0x4, offset = 0x4, fixed_abs, tag = 'smem constant byte address 0x4 - core index']
  #allocation1 [shape = 'u32[144,128]{1,0:T(1,128)}', space=vmem, size = 0x12000, scoped, tag = 'internal scratch']
  %s0 = inlined_call_operand.hbm [shape: f32[16,32], index: 0, kind: input, shape index: {}]
  %s1 = inlined_call_operand.hbm [shape: f32[32,128], index: 1, kind: input, shape index: {}]
  %s2 = inlined_call_operand.vmem [shape: f32[16,128], index: 2, kind: output, shape index: {}]
  %s3 = sld [smem:[#allocation0]]
  $region57: #{key_forward_prepared.1} parent=0
    _
  %s5 = ssub.s32 1, %s3
  %s6 = scalar_select 0, %s5, %s3
  $region1: #{key_forward_prepared.1} parent=0
    #allocation2 [shape = 'u8[8192]{0}', space=vmem, size = 0x2000, scoped, tag = 'input window, operand 0']
    #allocation3 [shape = 's32[2]{0}', space=sflag, size = 0x8, scoped, tag = 'scoped memory for key_forward_prepared.1']
    #allocation4 [shape = 'u8[16384]{0}', space=vmem, size = 0x4000, scoped, tag = 'input window, operand 1, single buffered']
    #allocation5 [shape = 's32[1]{0}', space=sflag, size = 0x4, scoped, tag = 'scoped memory for key_forward_prepared.1']
    %7 = vsyncpa [#allocation3], 0
    %s8 = scalar_lea.sflag [#allocation3], 1
    %9 = vsyncpa %s8, 0
    %10 = vsyncpa [#allocation5], 0
    loop: start=0, step=1, limit=4
    $region2: #{key_forward_prepared.1} parent=1 // loop_pre_header
      _
    $region3: #{key_forward_prepared.1} parent=1 // loop_header
      %s12 = sphi 0, %s16
      %p13 = scmp.ge.s32.totalorder %s12, 4
      %s19 = sphi 0, %s38
      %s20 = sphi 0, %s34
      %s21 = sphi 0, %s30
      %s22 = sphi 0, %s19
      %s23 = sphi 0, %s20
      %s24 = sphi 0, %s21
      %s25 = sphi 0, %s22
      %s26 = sphi 0, %s23
      %s27 = sphi 0, %s24
      %s43 = sphi 0, %s45
      %s46 = sphi 0, %s43
      %s47 = sphi 0, %s46
      %s63 = sphi 0, %s47
      %s71 = sphi 0, %s73
      %s74 = sphi 0, %s71
      %s75 = sphi 0, %s74
      %s91 = sphi 0, %s75
      %s99 = sphi 0, %s101
      %s102 = sphi 0, %s99
      %s103 = sphi 0, %s102
      %s119 = sphi 0, %s103
    $region4: #{key_forward_prepared.1} parent=1 // loop_header_branch
      %15 = sbr.rel (%p13) target = $region8
    $region5: #{key_forward_prepared.1} parent=1 // loop_body
      %s17 = ssub.s32 %s12, 1
      %s18 = ssub.s32 %s12, 2
      %s28 = sadd.s32 1, %s21
      %p29 = scmp.ge.s32.totalorder %s28, 1
      %s30 = scalar_select %p29, 0, %s28
      %s31 = sadd.s32 1, %s20
      %s32 = scalar_select %p29, %s31, %s20
      %p33 = scmp.ge.s32.totalorder %s32, 1
      %s34 = scalar_select %p33, 0, %s32
      %s35 = sadd.s32 1, %s19
      %s36 = scalar_select %p33, %s35, %s19
      %p37 = scmp.ge.s32.totalorder %s36, 2
      %s38 = scalar_select %p37, 0, %s36
      %s39 = ssub.s32 %s19, %s38
      %s40 = ssub.s32 %s21, %s30
      %s41 = sor.u32 %s39, %s40
      %p42 = scmp.eq.s32.totalorder %s41, 0
      %s44 = sadd.s32 %s43, 1
      %s45 = scalar_select %p42, %s43, %s44
      %p48 = pneg %p42
      %p49 = scmp.eq.s32.totalorder %s12, 1
      %p50 = por %p48, %p49
      %p51 = scmp.ne.s32.totalorder %s43, %s46
      %p52 = scmp.eq.s32.totalorder %s12, 0
      %p53 = por %p51, %p52
      %p54 = scmp.ne.s32.totalorder %s43, %s46
      %p55 = scmp.eq.s32.totalorder %s17, 1
      %p56 = por %p54, %p55
      %p57 = scmp.ne.s32.totalorder %s46, %s47
      %p58 = scmp.eq.s32.totalorder %s17, 0
      %p59 = por %p57, %p58
      %p60 = scmp.ne.s32.totalorder %s46, %s47
      %p61 = scmp.eq.s32.totalorder %s18, 1
      %p62 = por %p60, %p61
      %p64 = scmp.ne.s32.totalorder %s47, %s63
      %p65 = scmp.eq.s32.totalorder %s18, 0
      %p66 = por %p64, %p65
      %s67 = ssub.s32 %s21, %s30
      %s68 = ssub.s32 %s20, %s34
      %s69 = sor.u32 %s67, %s68
      %p70 = scmp.eq.s32.totalorder %s69, 0
      %s72 = sadd.s32 %s71, 1
      %s73 = scalar_select %p70, %s71, %s72
      %p76 = pneg %p70
      %p77 = scmp.eq.s32.totalorder %s12, 1
      %p78 = por %p76, %p77
      %p79 = scmp.ne.s32.totalorder %s71, %s74
      %p80 = scmp.eq.s32.totalorder %s12, 0
      %p81 = por %p79, %p80
      %p82 = scmp.ne.s32.totalorder %s71, %s74
      %p83 = scmp.eq.s32.totalorder %s17, 1
      %p84 = por %p82, %p83
      %p85 = scmp.ne.s32.totalorder %s74, %s75
      %p86 = scmp.eq.s32.totalorder %s17, 0
      %p87 = por %p85, %p86
      %p88 = scmp.ne.s32.totalorder %s74, %s75
      %p89 = scmp.eq.s32.totalorder %s18, 1
      %p90 = por %p88, %p89
      %p92 = scmp.ne.s32.totalorder %s75, %s91
      %p93 = scmp.eq.s32.totalorder %s18, 0
      %p94 = por %p92, %p93
      %s95 = ssub.s32 %s19, %s38
      %s96 = ssub.s32 %s20, %s34
      %s97 = sor.u32 %s95, %s96
      %p98 = scmp.eq.s32.totalorder %s97, 0
      %s100 = sadd.s32 %s99, 1
      %s101 = scalar_select %p98, %s99, %s100
      %p104 = pneg %p98
      %p105 = scmp.eq.s32.totalorder %s12, 1
      %p106 = por %p104, %p105
      %p107 = scmp.ne.s32.totalorder %s99, %s102
      %p108 = scmp.eq.s32.totalorder %s12, 0
      %p109 = por %p107, %p108
      %p110 = scmp.ne.s32.totalorder %s99, %s102
      %p111 = scmp.eq.s32.totalorder %s17, 1
      %p112 = por %p110, %p111
      %p113 = scmp.ne.s32.totalorder %s102, %s103
      %p114 = scmp.eq.s32.totalorder %s17, 0
      %p115 = por %p113, %p114
      %p116 = scmp.ne.s32.totalorder %s102, %s103
      %p117 = scmp.eq.s32.totalorder %s18, 1
      %p118 = por %p116, %p117
      %p120 = scmp.ne.s32.totalorder %s103, %s119
      %p121 = scmp.eq.s32.totalorder %s18, 0
      %p122 = por %p120, %p121
      %p123 = scmp.le.s32.totalorder 1, %s12
      %p124 = scmp.lt.s32.totalorder %s12, 3
      %p125 = pnand %p123, %p124
      %p126 = pneg %p125
      // Predicated region
      $region9: #{key_forward_prepared.1} parent=5 // pred_check
        _
      $region10: #{key_forward_prepared.1} parent=5 // pred_check_branch
        %128 = sbr.rel (%p125) target = $region12
      $region11: #{key_forward_prepared.1} parent=5 // pred_region
        %s129 = ssub.s32 %s12, 1
        // Predicated region
        $region13: #{key_forward_prepared.1} parent=11 // pred_check
          %p130 = pneg %p87
        $region14: #{key_forward_prepared.1} parent=11 // pred_check_branch
          %132 = sbr.rel (%p130) target = $region16
        $region15: #{key_forward_prepared.1} parent=11 // pred_region
          %s133 = smul.u32 4, %s24
          %s135 = ssub.s32 512, 512
          %136 = vsyncadd [#allocation5], %s135
          %s137 = sadd.s32 %s23, %s133
          %s138 = smul.addr %s137, 128
          %s139 = scalar_lea.hbm %s1, %s138
          %s140 = sshll.u32 [#allocation4], 4
          %s141 = int_to_ptr.vmem [resolvable:$true] %s140
          %146 = dma.hbm_to_vmem [thread:$0]  %s139, 512, %s141, [#allocation5], 128, 128, 8
        $region16: #{key_forward_prepared.1} parent=11 // pred_fallthru
          _
      $region12: #{key_forward_prepared.1} parent=5 // pred_fallthru
        _
      %p147 = scmp.lt.s32.totalorder %s12, 2
      // Predicated region
      $region17: #{key_forward_prepared.1} parent=5 // pred_check
        %p148 = pneg %p147
      $region18: #{key_forward_prepared.1} parent=5 // pred_check_branch
        %150 = sbr.rel (%p148) target = $region20
      $region19: #{key_forward_prepared.1} parent=5 // pred_region
        // Predicated region
        $region21: #{key_forward_prepared.1} parent=19 // pred_check
          %p151 = pneg %p53
        $region22: #{key_forward_prepared.1} parent=19 // pred_check_branch
          %153 = sbr.rel (%p151) target = $region24
        $region23: #{key_forward_prepared.1} parent=19 // pred_region
          %s154 = sand.u32 %s43, 1
          %s155 = scalar_lea.sflag [#allocation3], %s154
          %s156 = sand.u32 %s43, 1
          %s157 = smul.addr %s156, 8
          %s158 = scalar_lea.vmem [#allocation2], %s157
          %s160 = ssub.s32 128, 128
          %161 = vsyncadd %s155, %s160
          %s162 = sadd.s32 %s21, %s19
          %s163 = smul.addr %s162, 128
          %s164 = scalar_lea.hbm %s0, %s163
          %s166 = sshll.u32 %s158, 4
          %s167 = int_to_ptr.vmem [resolvable:$true] %s166
          %169 = dma.hbm_to_vmem [thread:$0]  %s164, 128, %s167, %s155
        $region24: #{key_forward_prepared.1} parent=19 // pred_fallthru
          _
      $region20: #{key_forward_prepared.1} parent=5 // pred_fallthru
        _
      %p170 = scmp.le.s32.totalorder 1, %s12
      %p171 = scmp.lt.s32.totalorder %s12, 3
      %p172 = pnand %p170, %p171
      %p173 = pneg %p172
      // Predicated region
      $region25: #{key_forward_prepared.1} parent=5 // pred_check
        _
      $region26: #{key_forward_prepared.1} parent=5 // pred_check_branch
        %175 = sbr.rel (%p172) target = $region28
      $region27: #{key_forward_prepared.1} parent=5 // pred_region
        %s176 = ssub.s32 %s12, 1
        %s177 = sand.u32 %s46, 1
        %s178 = scalar_lea.sflag [#allocation3], %s177
        %s179 = sand.u32 %s46, 1
        %s180 = smul.addr %s179, 8
        %s181 = scalar_lea.vmem [#allocation2], %s180
        // Predicated region
        $region29: #{key_forward_prepared.1} parent=27 // pred_check
          %p182 = pneg %p59
        $region30: #{key_forward_prepared.1} parent=27 // pred_check_branch
          %184 = sbr.rel (%p182) target = $region32
        $region31: #{key_forward_prepared.1} parent=27 // pred_region
          %185 = dma.done %s178, 128
        $region32: #{key_forward_prepared.1} parent=27 // pred_fallthru
          _
        // Predicated region
        $region33: #{key_forward_prepared.1} parent=27 // pred_check
          %p186 = pneg %p87
        $region34: #{key_forward_prepared.1} parent=27 // pred_check_branch
          %188 = sbr.rel (%p186) target = $region36
        $region35: #{key_forward_prepared.1} parent=27 // pred_region
          %189 = dma.done [#allocation5], 512
        $region36: #{key_forward_prepared.1} parent=27 // pred_fallthru
          _
        %s190 = sand.u32 %s46, 1
        %s191 = scalar_lea.sflag [#allocation3], %s190
        %s192 = sand.u32 %s46, 1
        %s193 = smul.addr %s192, 8
        %s194 = scalar_lea.vmem [#allocation2], %s193
        %p195 = pneg %p59
        %p196 = pneg %p56
        %p197 = pneg %p87
        %p198 = pneg %p84
        %p199 = pneg %p115
        %p200 = pneg %p112
        %p201 = scmp.lt.s32.totalorder %s22, 1
        %s202 = scalar_select %p201, %s22, 1
        %p203 = scmp.lt.s32.totalorder %s23, 0
        %s204 = scalar_select %p203, %s23, 0
        %s205 = sadd.s32 %s204, %s202
        %s206 = smul.addr %s205, 8
        %s207 = scalar_lea.vmem %s2, %s206
        %s208 = smul.u32 4, %s24
        %p209 = scmp.lt.s32.totalorder %s22, 1
        %s210 = scalar_select %p209, %s22, 1
        %p211 = scmp.lt.s32.totalorder %s23, 0
        %s212 = scalar_select %p211, %s23, 0
        %s213 = sadd.s32 %s212, %s210
        %s214 = smul.addr %s213, 8
        %s215 = scalar_lea.vmem %s2, %s214
        %v216 = vld [vmem:[%s181] sm:$0xff]
        %v217 = vld [vmem:[#allocation4] sm:$0xff]
        %v218 = vld [vmem:[#allocation4 + $0x8] sm:$0xff]
        %v219 = vld [vmem:[#allocation4 + $0x10] sm:$0xff]
        %v220 = vld [vmem:[#allocation4 + $0x18] sm:$0xff]
        %vm221 = vcmask 261120
        %v223 = vsel %vm221, %v216, 0
        %225 = vmatprep.subr.mxu0 0.0
        %226 = vmatpush1.msra.mxu0 0.0
        %227 = vmatprep.subr.mxu0 0.0
        %228 = vmatpush1.msra.mxu0 0.0
        %229 = vmatprep.subr.mxu0 0.0
        %230 = vmatpush1.msra.mxu0 0.0
        %231 = vmatprep.subr.mxu0 0.0
        %232 = vmatpush1.msra.mxu0 0.0
        %233 = vmatprep.subr.mxu0 0.0
        %234 = vmatpush1.msra.mxu0 0.0
        %235 = vmatprep.subr.mxu0 0.0
        %236 = vmatpush1.msra.mxu0 0.0
        %237 = vmatprep.subr.mxu0 0.0
        %238 = vmatpush1.msra.mxu0 0.0
        %239 = vmatprep.subr.mxu0 0.0
        %240 = vmatpush1.msra.mxu0 0.0
        %241 = vmatprep.subr.mxu0 0.0
        %242 = vmatpush1.msra.mxu0 0.0
        %243 = vmatprep.subr.mxu0 0.0
        %244 = vmatpush1.msra.mxu0 0.0
        %245 = vmatprep.subr.mxu0 0.0
        %246 = vmatpush1.msra.mxu0 0.0
        %247 = vmatprep.subr.mxu0 0.0
        %248 = vmatpush1.msra.mxu0 0.0
        %249 = vmatprep.subr.mxu0 0.0
        %250 = vmatpush1.msra.mxu0 %v220
        %251 = vmatprep.subr.mxu0 0.0
        %252 = vmatpush1.msra.mxu0 %v219
        %253 = vmatprep.subr.mxu0 0.0
        %254 = vmatpush1.msra.mxu0 %v218
        %255 = vmatprep.subr.mxu0 0.0
        %256 = vmatpush1.msra.mxu0 %v217
        %257 = vmatprep.subr.mxu0 0.0
        %258 = vmatpush2.msra.mxu0 0.0
        %259 = vmatprep.subr.mxu0 0.0
        %260 = vmatpush2.msra.mxu0 0.0
        %261 = vmatprep.subr.mxu0 0.0
        %262 = vmatpush2.msra.mxu0 0.0
        %263 = vmatprep.subr.mxu0 0.0
        %264 = vmatpush2.msra.mxu0 0.0
        %265 = vmatprep.subr.mxu0 0.0
        %266 = vmatpush2.msra.mxu0 0.0
        %267 = vmatprep.subr.mxu0 0.0
        %268 = vmatpush2.msra.mxu0 0.0
        %269 = vmatprep.subr.mxu0 0.0
        %270 = vmatpush2.msra.mxu0 0.0
        %271 = vmatprep.subr.mxu0 0.0
        %272 = vmatpush2.msra.mxu0 0.0
        %273 = vmatprep.subr.mxu0 0.0
        %274 = vmatpush2.msra.mxu0 0.0
        %275 = vmatprep.subr.mxu0 0.0
        %276 = vmatpush2.msra.mxu0 0.0
        %277 = vmatprep.subr.mxu0 0.0
        %278 = vmatpush2.msra.mxu0 0.0
        %279 = vmatprep.subr.mxu0 0.0
        %280 = vmatpush2.msra.mxu0 0.0
        %281 = vmatprep.subr.mxu0 0.0
        %282 = vmatpush2.msra.mxu0 0.0
        %283 = vmatprep.subr.mxu0 0.0
        %284 = vmatpush2.msra.mxu0 0.0
        %285 = vmatprep.subr.mxu0 0.0
        %286 = vmatpush2.msra.mxu0 0.0
        %287 = vmatprep.subr.mxu0 0.0
        %288 = vmatpush2.msra.mxu0 0.0
        %289 = vmatprep.mubr.f32.mxu0 0.0
        %290 = vmatmul.mubr.f32.gmra.mxu0 %v223
        %v291 = vpop.f32.mrf.mxu0
        %v292 = vadd.f32 0.0, %v291
        %v293 = vpop.f32.mrf.mxu0
        %294 = vdwg.mxu0
        %p295 = scmp.eq.s32.totalorder %s24, 0
        // Predicated region
        $region37: #{key_forward_prepared.1} parent=27 // pred_check
          %p296 = pneg %p295
        $region38: #{key_forward_prepared.1} parent=27 // pred_check_branch
          %298 = sbr.rel (%p296) target = $region40
        $region39: #{key_forward_prepared.1} parent=27 // pred_region
          %299 = vst [vmem:[%s215] sm:$0xff] %v292
        $region40: #{key_forward_prepared.1} parent=27 // pred_fallthru
          _
        %p300 = scmp.gt.s32.totalorder %s24, 0
        // Predicated region
        $region41: #{key_forward_prepared.1} parent=27 // pred_check
          %p301 = pneg %p300
        $region42: #{key_forward_prepared.1} parent=27 // pred_check_branch
          %303 = sbr.rel (%p301) target = $region44
        $region43: #{key_forward_prepared.1} parent=27 // pred_region
          %v304 = vld [vmem:[%s215] sm:$0xff]
          %v305 = vadd.f32 %v304, %v292
          %306 = vst [vmem:[%s215] sm:$0xff] %v305
        $region44: #{key_forward_prepared.1} parent=27 // pred_fallthru
          _
        %p307 = scmp.lt.s32.totalorder %s22, 1
        %s308 = scalar_select %p307, %s22, 1
        %p309 = scmp.lt.s32.totalorder %s23, 0
        %s310 = scalar_select %p309, %s23, 0
        %s311 = sadd.s32 %s310, %s308
        %s312 = smul.addr %s311, 8
        %s313 = scalar_lea.vmem %s2, %s312
        // Predicated region
        $region45: #{key_forward_prepared.1} parent=27 // pred_check
          %p314 = pneg %p112
        $region46: #{key_forward_prepared.1} parent=27 // pred_check_branch
          %316 = sbr.rel (%p314) target = $region48
        $region47: #{key_forward_prepared.1} parent=27 // pred_region
          _
        $region48: #{key_forward_prepared.1} parent=27 // pred_fallthru
          _
      $region28: #{key_forward_prepared.1} parent=5 // pred_fallthru
        _
      %p317 = scmp.le.s32.totalorder 2, %s12
      // Predicated region
      $region49: #{key_forward_prepared.1} parent=5 // pred_check
        %p318 = pneg %p317
      $region50: #{key_forward_prepared.1} parent=5 // pred_check_branch
        %320 = sbr.rel (%p318) target = $region52
      $region51: #{key_forward_prepared.1} parent=5 // pred_region
        %s321 = ssub.s32 %s12, 2
        // Predicated region
        $region53: #{key_forward_prepared.1} parent=51 // pred_check
          %p322 = pneg %p118
        $region54: #{key_forward_prepared.1} parent=51 // pred_check_branch
          %324 = sbr.rel (%p322) target = $region56
        $region55: #{key_forward_prepared.1} parent=51 // pred_region
          %p325 = scmp.lt.s32.totalorder %s25, 1
          %s326 = scalar_select %p325, %s25, 1
          %p327 = scmp.lt.s32.totalorder %s26, 0
          %s328 = scalar_select %p327, %s26, 0
          %s329 = sadd.s32 %s328, %s326
          %s330 = smul.addr %s329, 8
          %s331 = scalar_lea.vmem %s2, %s330
        $region56: #{key_forward_prepared.1} parent=51 // pred_fallthru
          _
      $region52: #{key_forward_prepared.1} parent=5 // pred_fallthru
        _
    $region6: #{key_forward_prepared.1} parent=1 // loop_footer
      %s16 = sadd.s32 1, %s12
    $region7: #{key_forward_prepared.1} parent=1 // loop_footer_branch
      %11 = sbr.rel target = $region3
    $region8: #{key_forward_prepared.1} parent=1 // loop_exit
      _
    %332 = vsyncpa [#allocation3], 1
    %s333 = scalar_lea.sflag [#allocation3], 1
    %334 = vsyncpa %s333, 1
    %335 = vsyncpa [#allocation5], 1

</llo_original>
